<compile_context>
chip_gen: v6e
topology: v6e:2x2x1
jax: 0.10.0
libtpu: 0.0.40
codegen_flags: <defaults>
</compile_context>

<pallas_src>
import jax
import jax.numpy as jnp
from jax.experimental import pallas as pl
from jax.experimental.pallas import tpu as pltpu


# dtype fed to the MXU (f32 accumulation via preferred_element_type); all VPU math stays f32.
MATMUL_DTYPE = jnp.bfloat16
_VMEM_LIMIT = 64 * 1024 * 1024          # <= physical VMEM on v5e/v6e (128 MiB) and v7x (64 MiB)


def _pick_tile(n, max_tile, align):
    """Largest multiple of `align` that is <= max_tile and divides n; else n (full dim)."""
    if n <= max_tile:
        return n
    t = (max_tile // align) * align
    while t >= align:
        if n % t == 0:
            return t
        t -= align
    return n


# ---------------------------------------------------------------------------
# Pallas kernel 1: pairwise squared distances, tiled, transposed layout
# ---------------------------------------------------------------------------
def _pdist_kernel(p1t_ref, p2_ref, d_ref):
    # p1t_ref: (1, TN1, 3) channels-last, p2_ref: (1, 3, TN2) channels-first,
    # d_ref: (1, TN1, TN2).  Per-coordinate accumulation: 3 fused mul-add passes on the
    # VPU over a single (TN1, TN2) f32 tile -- no (3, TN1, TN2) broadcast temporary.
    p1 = p1t_ref[0].astype(jnp.float32)            # (TN1, 3)
    p2 = p2_ref[0].astype(jnp.float32)             # (3, TN2)
    d0 = p1[:, 0:1] - p2[0:1, :]                   # (TN1,1)-(1,TN2) -> (TN1, TN2)
    acc = d0 * d0
    d1 = p1[:, 1:2] - p2[1:2, :]
    acc = acc + d1 * d1
    d2 = p1[:, 2:3] - p2[2:3, :]
    acc = acc + d2 * d2
    d_ref[0] = acc


def pdist2squared(p1t, points2):
    """Squared pairwise distances.

    p1t: (B, N1, 3) channels-last, points2: (B, 3, N2) channels-first.
    Returns (B, N1, N2) with d[b,i,j] = ||p1[b,i,:] - p2[b,:,j]||^2 -- i.e. already in the
    layout lax.top_k over the last axis needs (no transpose of the large matrix).
    """
    B, N1, _ = p1t.shape
    N2 = points2.shape[2]
    tn1 = _pick_tile(N1, 256, 8)
    tn2 = _pick_tile(N2, 512, 128)
    grid = (B, N1 // tn1, N2 // tn2)
    return pl.pallas_call(
        _pdist_kernel,
        out_shape=jax.ShapeDtypeStruct((B, N1, N2), jnp.float32),
        grid=grid,
        in_specs=[
            pl.BlockSpec((1, tn1, 3), lambda b, i, j: (b, i, 0)),
            pl.BlockSpec((1, 3, tn2), lambda b, i, j: (b, 0, j)),
        ],
        out_specs=pl.BlockSpec((1, tn1, tn2), lambda b, i, j: (b, i, j)),
        compiler_params=pltpu.CompilerParams(
            dimension_semantics=("parallel", "parallel", "parallel"),
            vmem_limit_bytes=_VMEM_LIMIT),
    )(p1t, points2)


# ---------------------------------------------------------------------------
# Pallas kernel 2: fused (Conv1x1+BN+ReLU) stack + max over the S samples
# ---------------------------------------------------------------------------
def _make_flowemb_kernel(num_layers, num_samples):
    def kernel(*refs):
        xg_ref, f1_ref = refs[0], refs[1]          # (1, S, TILE_N1, 3+C), (1, TILE_N1, C)
        out_ref = refs[-1]                         # (1, TILE_N1, Cout)
        params = [r[...] for r in refs[2:-1]]      # small, load once per grid step

        w0a, w0b = params[0], params[1]
        b0 = params[2].astype(jnp.float32)
        mm_dtype = w0a.dtype

        # features1 (+ bias) contribution of the first fused Conv+BN layer: split matmul,
        # computed once per point and shared across all S samples (no concat / S-expansion).
        pt = jnp.dot(f1_ref[0].astype(mm_dtype), w0b,
                     preferred_element_type=jnp.float32) + b0          # (TILE_N1, C0)

        m = None
        for s in range(num_samples):               # unrolled; one sample's chain live at a time
            x_s = xg_ref[0, s].astype(mm_dtype)                        # (TILE_N1, 3+C)
            h = jnp.maximum(
                jnp.dot(x_s, w0a, preferred_element_type=jnp.float32) + pt, 0.0)
            idx = 3
            for _ in range(1, num_layers):
                w = params[idx]
                b = params[idx + 1]                # f32 bias
                idx += 2
                h = jnp.maximum(
                    jnp.dot(h.astype(mm_dtype), w,
                            preferred_element_type=jnp.float32) + b, 0.0)
            m = h if m is None else jnp.maximum(m, h)                  # running max over S

        out_ref[0] = m.astype(out_ref.dtype)

    return kernel


def flow_embedding_mlp(xg, f1, conv_params):
    """xg: (B, S, N1, 3+C) sample-major grouped tensor, f1: (B, N1, C) channels-last.

    Applies the folded Conv2d(1x1)+BN+ReLU stack per (point, sample) position and takes the
    max over samples.  Returns (B, N1, Cout) channels-last (lane-dense output).
    """
    B, S, N1, cin_g = xg.shape
    C = f1.shape[-1]
    num_layers = len(conv_params)
    cout = conv_params[-1][0].shape[1]

    w0, b0 = conv_params[0]
    assert w0.shape[0] == cin_g + C, (w0.shape, cin_g, C)
    flat = [w0[:cin_g].astype(MATMUL_DTYPE),       # rows acting on [coords; gathered features2]
            w0[cin_g:].astype(MATMUL_DTYPE),       # rows acting on features1 (shared over S)
            b0.astype(jnp.float32)]
    for w, b in conv_params[1:]:
        flat += [w.astype(MATMUL_DTYPE), b.astype(jnp.float32)]

    xg = xg.astype(MATMUL_DTYPE)                   # halve HBM traffic of the largest input
    f1 = f1.astype(MATMUL_DTYPE)

    tile_n1 = _pick_tile(N1, 256, 8)               # 256-point tile also fits v7x scoped VMEM
    grid = (B, N1 // tile_n1)

    in_specs = [
        pl.BlockSpec((1, S, tile_n1, cin_g), lambda b, i: (b, 0, i, 0)),
        pl.BlockSpec((1, tile_n1, C), lambda b, i: (b, i, 0)),
    ]
    in_specs += [pl.BlockSpec(p.shape, lambda b, i: (0, 0)) for p in flat]

    return pl.pallas_call(
        _make_flowemb_kernel(num_layers, S),
        out_shape=jax.ShapeDtypeStruct((B, N1, cout), jnp.float32),
        grid=grid,
        in_specs=in_specs,
        out_specs=pl.BlockSpec((1, tile_n1, cout), lambda b, i: (b, i, 0)),
        compiler_params=pltpu.CompilerParams(
            dimension_semantics=("parallel", "parallel"),
            vmem_limit_bytes=_VMEM_LIMIT),
    )(xg, f1, *flat)


# ---------------------------------------------------------------------------
# Plain-JAX glue: kNN selection + gather + layout plumbing (FlowEmbedding.forward)
# ---------------------------------------------------------------------------
def flow_embedding_forward(points1, points2, features1, features2, num_samples, conv_params):
    """points1 (B,3,N1), points2 (B,3,N2), features1 (B,C,N1), features2 (B,C,N2)
    -> (B, Cout, N1), matching FlowEmbedding.forward (eval-mode BN folded)."""
    S = num_samples
    p1t = jnp.transpose(points1, (0, 2, 1))        # (B, N1, 3)
    p2t = jnp.transpose(points2, (0, 2, 1))        # (B, N2, 3)
    f1t = jnp.transpose(features1, (0, 2, 1))      # (B, N1, C)
    f2t = jnp.transpose(features2, (0, 2, 1))      # (B, N2, C)

    # squared distances already in the (B, N1, N2) layout top_k wants       [Pallas]
    dist = pdist2squared(p1t, points2)

    # TODO(synk): k-nearest selection + index gather stay in XLA (lax.top_k / vmapped take);
    # fusing a running top-S into the pdist kernel and an in-kernel scalar-prefetch DMA
    # gather are the remaining (advanced) HBM optimizations.
    _, ind = jax.lax.top_k(-dist, S)               # (B, N1, S): S nearest points2 per point1
    ind_sm = jnp.transpose(ind, (0, 2, 1))         # (B, S, N1) (tiny) -> gather writes the
                                                   # grouped tensor sample-major directly
    gather = jax.vmap(lambda arr, idx: arr[idx])
    gp = gather(p2t, ind_sm)                       # (B, S, N1, 3)
    gf = gather(f2t, ind_sm)                       # (B, S, N1, C)
    gp = gp - p1t[:, None, :, :]                   # grouped_points - points1
    xg = jnp.concatenate([gp, gf], axis=-1)        # (B, S, N1, 3+C); fuses with the gather

    out = flow_embedding_mlp(xg, f1t, conv_params)  # (B, N1, Cout)           [Pallas]
    return jnp.transpose(out, (0, 2, 1))           # (B, Cout, N1)


# ---------------------------------------------------------------------------
# Deterministic parameter construction: Conv2d(1x1) + BatchNorm2d(eval) folded
# ---------------------------------------------------------------------------
def init_conv_bn(key, cin, cout, eps=1e-3):
    k1, k2, k3, k4, k5, k6 = jax.random.split(key, 6)
    W = jax.random.normal(k1, (cin, cout), jnp.float32) / jnp.sqrt(float(cin))
    b = 0.1 * jax.random.normal(k2, (cout,), jnp.float32)
    gamma = 1.0 + 0.1 * jax.random.normal(k3, (cout,), jnp.float32)
    beta = 0.1 * jax.random.normal(k4, (cout,), jnp.float32)
    mean = 0.1 * jax.random.normal(k5, (cout,), jnp.float32)
    var = 1.0 + 0.5 * jax.random.uniform(k6, (cout,), jnp.float32)
    scale = gamma / jnp.sqrt(var + eps)
    W_eff = W * scale[None, :]
    b_eff = ((b - mean) * scale + beta).reshape(1, cout)
    return W_eff, b_eff


if __name__ == "__main__":
    key = jax.random.PRNGKey(0)
    B, N1, N2 = 2, 16, 16
    C = 4                      # in_channels
    num_samples = 4
    out_channels = (8, 16)

    k = jax.random.split(key, 5)
    points1 = jax.random.normal(k[0], (B, 3, N1), jnp.float32)
    points2 = jax.random.normal(k[1], (B, 3, N2), jnp.float32)
    features1 = jax.random.normal(k[2], (B, C, N1), jnp.float32)
    features2 = jax.random.normal(k[3], (B, C, N2), jnp.float32)

    # conv channel chain: [2*in_channels + 3, *out_channels]
    chain = [2 * C + 3, *out_channels]
    pkeys = jax.random.split(k[4], len(chain) - 1)
    conv_params = [init_conv_bn(pkeys[i - 1], chain[i - 1], chain[i])
                   for i in range(1, len(chain))]

    out = flow_embedding_forward(points1, points2, features1, features2,
                                 num_samples, conv_params)
    out = jax.block_until_ready(out)
    assert out.shape == (B, out_channels[-1], N1), out.shape
    print("KERNEL_OK")
</pallas_src>

<mosaic_0001>
module attributes {stable_mosaic.version = 11 : i64} {
  func.func @_pdist_kernel(%arg0: i32, %arg1: i32, %arg2: i32, %arg3: memref<1x16x3xf32, #tpu.memory_space<vmem>>, %arg4: memref<1x3x16xf32, #tpu.memory_space<vmem>>, %arg5: memref<1x16x16xf32, #tpu.memory_space<vmem>>) attributes {dimension_semantics = [#tpu.dimension_semantics<parallel>, #tpu.dimension_semantics<parallel>, #tpu.dimension_semantics<parallel>], iteration_bounds = array<i64: 2, 1, 1>, scalar_prefetch = 0 : i64, scratch_operands = 0 : i64, tpu.core_type = #tpu.core_type<tc>, window_params = [{transform_indices = @transform_0, window_bounds = array<i64: 1, 16, 3>}, {transform_indices = @transform_1, window_bounds = array<i64: 1, 3, 16>}, {transform_indices = @transform_2, window_bounds = array<i64: 1, 16, 16>}]} {
    %c0 = arith.constant 0 : index
    %c0_0 = arith.constant 0 : index
    %c0_1 = arith.constant 0 : index
    %0 = vector.load %arg3[%c0, %c0_0, %c0_1] : memref<1x16x3xf32, #tpu.memory_space<vmem>>, vector<1x16x3xf32>
    %1 = vector.shape_cast %0 : vector<1x16x3xf32> to vector<16x3xf32>
    %c0_2 = arith.constant 0 : index
    %c0_3 = arith.constant 0 : index
    %c0_4 = arith.constant 0 : index
    %2 = vector.load %arg4[%c0_2, %c0_3, %c0_4] : memref<1x3x16xf32, #tpu.memory_space<vmem>>, vector<1x3x16xf32>
    %3 = vector.shape_cast %2 : vector<1x3x16xf32> to vector<3x16xf32>
    %4 = vector.extract_strided_slice %1 {offsets = [0, 0], sizes = [16, 1], strides = [1, 1]} : vector<16x3xf32> to vector<16x1xf32>
    %5 = vector.extract_strided_slice %3 {offsets = [0, 0], sizes = [1, 16], strides = [1, 1]} : vector<3x16xf32> to vector<1x16xf32>
    %6 = vector.broadcast %4 : vector<16x1xf32> to vector<16x16xf32>
    %7 = vector.broadcast %5 : vector<1x16xf32> to vector<16x16xf32>
    %8 = arith.subf %6, %7 : vector<16x16xf32>
    %9 = arith.mulf %8, %8 : vector<16x16xf32>
    %10 = vector.extract_strided_slice %1 {offsets = [0, 1], sizes = [16, 1], strides = [1, 1]} : vector<16x3xf32> to vector<16x1xf32>
    %11 = vector.extract_strided_slice %3 {offsets = [1, 0], sizes = [1, 16], strides = [1, 1]} : vector<3x16xf32> to vector<1x16xf32>
    %12 = vector.broadcast %10 : vector<16x1xf32> to vector<16x16xf32>
    %13 = vector.broadcast %11 : vector<1x16xf32> to vector<16x16xf32>
    %14 = arith.subf %12, %13 : vector<16x16xf32>
    %15 = arith.mulf %14, %14 : vector<16x16xf32>
    %16 = arith.addf %9, %15 : vector<16x16xf32>
    %17 = vector.extract_strided_slice %1 {offsets = [0, 2], sizes = [16, 1], strides = [1, 1]} : vector<16x3xf32> to vector<16x1xf32>
    %18 = vector.extract_strided_slice %3 {offsets = [2, 0], sizes = [1, 16], strides = [1, 1]} : vector<3x16xf32> to vector<1x16xf32>
    %19 = vector.broadcast %17 : vector<16x1xf32> to vector<16x16xf32>
    %20 = vector.broadcast %18 : vector<1x16xf32> to vector<16x16xf32>
    %21 = arith.subf %19, %20 : vector<16x16xf32>
    %22 = arith.mulf %21, %21 : vector<16x16xf32>
    %23 = arith.addf %16, %22 : vector<16x16xf32>
    %c0_5 = arith.constant 0 : index
    %c0_6 = arith.constant 0 : index
    %c0_7 = arith.constant 0 : index
    %24 = vector.load %arg5[%c0_5, %c0_6, %c0_7] : memref<1x16x16xf32, #tpu.memory_space<vmem>>, vector<1x16x16xf32>
    %25 = vector.shape_cast %24 : vector<1x16x16xf32> to vector<16x16xf32>
    %26 = vector.shape_cast %23 : vector<16x16xf32> to vector<1x16x16xf32>
    tpu.vector_store %arg5[%c0_5, %c0_6, %c0_7], %26 {strides = array<i32>} : memref<1x16x16xf32, #tpu.memory_space<vmem>>, vector<1x16x16xf32>,
    return
  }
  func.func @transform_0(%arg0: i32, %arg1: i32, %arg2: i32) -> (i32, i32, i32) {
    %c0_i32 = arith.constant 0 : i32
    %c0_i32_0 = arith.constant 0 : i32
    return %arg0, %arg1, %c0_i32 : i32, i32, i32
  }
  func.func @transform_1(%arg0: i32, %arg1: i32, %arg2: i32) -> (i32, i32, i32) {
    %c0_i32 = arith.constant 0 : i32
    %c0_i32_0 = arith.constant 0 : i32
    return %arg0, %c0_i32, %arg2 : i32, i32, i32
  }
  func.func @transform_2(%arg0: i32, %arg1: i32, %arg2: i32) -> (i32, i32, i32) {
    %c0_i32 = arith.constant 0 : i32
    return %arg0, %arg1, %arg2 : i32, i32, i32
  }
}

</mosaic_0001>

<llo_original>
// kernel: tpu_custom_call.1
$region0: #{tpu_custom_call.1}
  #allocation0 [shape = 'u32[]', space=smem, size = 0x4, offset = 0x4, fixed_abs, tag = 'smem constant byte address 0x4 - core index']
  #allocation1 [shape = 'u32[144,128]{1,0:T(1,128)}', space=vmem, size = 0x12000, scoped, tag = 'internal scratch']
  %s0 = inlined_call_operand.vmem [shape: f32[2,16,3], index: 0, kind: input, shape index: {}]
  %s1 = inlined_call_operand.vmem [shape: f32[2,3,16], index: 1, kind: input, shape index: {}]
  %s2 = inlined_call_operand.hbm [shape: f32[2,16,16], index: 2, kind: output, shape index: {}]
  %s3 = sld [smem:[#allocation0]]
  $region41: #{tpu_custom_call.1} parent=0
    _
  %s5 = ssub.s32 1, %s3
  %s6 = scalar_select 0, %s5, %s3
  $region1: #{tpu_custom_call.1} parent=0
    #allocation2 [shape = 'u8[16384]{0}', space=vmem, size = 0x4000, scoped, tag = 'output window, operand 0']
    #allocation3 [shape = 's32[2]{0}', space=sflag, size = 0x8, scoped, tag = 'scoped memory for tpu_custom_call.1']
    %7 = vsyncpa [#allocation3], 0
    %s8 = scalar_lea.sflag [#allocation3], 1
    %9 = vsyncpa %s8, 0
    loop: start=0, step=1, limit=4
    $region2: #{tpu_custom_call.1} parent=1 // loop_pre_header
      _
    $region3: #{tpu_custom_call.1} parent=1 // loop_header
      %s11 = sphi 0, %s15
      %p12 = scmp.ge.s32.totalorder %s11, 4
      %s18 = sphi 0, %s37
      %s19 = sphi 0, %s33
      %s20 = sphi 0, %s29
      %s21 = sphi 0, %s18
      %s22 = sphi 0, %s19
      %s23 = sphi 0, %s20
      %s24 = sphi 0, %s21
      %s25 = sphi 0, %s22
      %s26 = sphi 0, %s23
      %s42 = sphi 0, %s44
      %s45 = sphi 0, %s42
      %s46 = sphi 0, %s45
      %s62 = sphi 0, %s46
      %s70 = sphi 0, %s72
      %s73 = sphi 0, %s70
      %s74 = sphi 0, %s73
      %s90 = sphi 0, %s74
      %s100 = sphi 0, %s102
      %s103 = sphi 0, %s100
      %s104 = sphi 0, %s103
      %s120 = sphi 0, %s104
    $region4: #{tpu_custom_call.1} parent=1 // loop_header_branch
      %14 = sbr.rel (%p12) target = $region8
    $region5: #{tpu_custom_call.1} parent=1 // loop_body
      %s16 = ssub.s32 %s11, 1
      %s17 = ssub.s32 %s11, 2
      %s27 = sadd.s32 1, %s20
      %p28 = scmp.ge.s32.totalorder %s27, 1
      %s29 = scalar_select %p28, 0, %s27
      %s30 = sadd.s32 1, %s19
      %s31 = scalar_select %p28, %s30, %s19
      %p32 = scmp.ge.s32.totalorder %s31, 1
      %s33 = scalar_select %p32, 0, %s31
      %s34 = sadd.s32 1, %s18
      %s35 = scalar_select %p32, %s34, %s18
      %p36 = scmp.ge.s32.totalorder %s35, 2
      %s37 = scalar_select %p36, 0, %s35
      %s38 = ssub.s32 %s18, %s37
      %s39 = ssub.s32 %s19, %s33
      %s40 = sor.u32 %s38, %s39
      %p41 = scmp.eq.s32.totalorder %s40, 0
      %s43 = sadd.s32 %s42, 1
      %s44 = scalar_select %p41, %s42, %s43
      %p47 = pneg %p41
      %p48 = scmp.eq.s32.totalorder %s11, 1
      %p49 = por %p47, %p48
      %p50 = scmp.ne.s32.totalorder %s42, %s45
      %p51 = scmp.eq.s32.totalorder %s11, 0
      %p52 = por %p50, %p51
      %p53 = scmp.ne.s32.totalorder %s42, %s45
      %p54 = scmp.eq.s32.totalorder %s16, 1
      %p55 = por %p53, %p54
      %p56 = scmp.ne.s32.totalorder %s45, %s46
      %p57 = scmp.eq.s32.totalorder %s16, 0
      %p58 = por %p56, %p57
      %p59 = scmp.ne.s32.totalorder %s45, %s46
      %p60 = scmp.eq.s32.totalorder %s17, 1
      %p61 = por %p59, %p60
      %p63 = scmp.ne.s32.totalorder %s46, %s62
      %p64 = scmp.eq.s32.totalorder %s17, 0
      %p65 = por %p63, %p64
      %s66 = ssub.s32 %s18, %s37
      %s67 = ssub.s32 %s20, %s29
      %s68 = sor.u32 %s66, %s67
      %p69 = scmp.eq.s32.totalorder %s68, 0
      %s71 = sadd.s32 %s70, 1
      %s72 = scalar_select %p69, %s70, %s71
      %p75 = pneg %p69
      %p76 = scmp.eq.s32.totalorder %s11, 1
      %p77 = por %p75, %p76
      %p78 = scmp.ne.s32.totalorder %s70, %s73
      %p79 = scmp.eq.s32.totalorder %s11, 0
      %p80 = por %p78, %p79
      %p81 = scmp.ne.s32.totalorder %s70, %s73
      %p82 = scmp.eq.s32.totalorder %s16, 1
      %p83 = por %p81, %p82
      %p84 = scmp.ne.s32.totalorder %s73, %s74
      %p85 = scmp.eq.s32.totalorder %s16, 0
      %p86 = por %p84, %p85
      %p87 = scmp.ne.s32.totalorder %s73, %s74
      %p88 = scmp.eq.s32.totalorder %s17, 1
      %p89 = por %p87, %p88
      %p91 = scmp.ne.s32.totalorder %s74, %s90
      %p92 = scmp.eq.s32.totalorder %s17, 0
      %p93 = por %p91, %p92
      %s94 = ssub.s32 %s18, %s37
      %s95 = ssub.s32 %s19, %s33
      %s96 = sor.u32 %s94, %s95
      %s97 = ssub.s32 %s20, %s29
      %s98 = sor.u32 %s96, %s97
      %p99 = scmp.eq.s32.totalorder %s98, 0
      %s101 = sadd.s32 %s100, 1
      %s102 = scalar_select %p99, %s100, %s101
      %p105 = pneg %p99
      %p106 = scmp.eq.s32.totalorder %s11, 1
      %p107 = por %p105, %p106
      %p108 = scmp.ne.s32.totalorder %s100, %s103
      %p109 = scmp.eq.s32.totalorder %s11, 0
      %p110 = por %p108, %p109
      %p111 = scmp.ne.s32.totalorder %s100, %s103
      %p112 = scmp.eq.s32.totalorder %s16, 1
      %p113 = por %p111, %p112
      %p114 = scmp.ne.s32.totalorder %s103, %s104
      %p115 = scmp.eq.s32.totalorder %s16, 0
      %p116 = por %p114, %p115
      %p117 = scmp.ne.s32.totalorder %s103, %s104
      %p118 = scmp.eq.s32.totalorder %s17, 1
      %p119 = por %p117, %p118
      %p121 = scmp.ne.s32.totalorder %s104, %s120
      %p122 = scmp.eq.s32.totalorder %s17, 0
      %p123 = por %p121, %p122
      %p124 = scmp.le.s32.totalorder 1, %s11
      %p125 = scmp.lt.s32.totalorder %s11, 3
      %p126 = pnand %p124, %p125
      %p127 = pneg %p126
      // Predicated region
      $region9: #{tpu_custom_call.1} parent=5 // pred_check
        _
      $region10: #{tpu_custom_call.1} parent=5 // pred_check_branch
        %129 = sbr.rel (%p126) target = $region12
      $region11: #{tpu_custom_call.1} parent=5 // pred_region
        %s130 = ssub.s32 %s11, 1
      $region12: #{tpu_custom_call.1} parent=5 // pred_fallthru
        _
      %p131 = scmp.lt.s32.totalorder %s11, 2
      // Predicated region
      $region13: #{tpu_custom_call.1} parent=5 // pred_check
        %p132 = pneg %p131
      $region14: #{tpu_custom_call.1} parent=5 // pred_check_branch
        %134 = sbr.rel (%p132) target = $region16
      $region15: #{tpu_custom_call.1} parent=5 // pred_region
        // Predicated region
        $region17: #{tpu_custom_call.1} parent=15 // pred_check
          %p135 = pneg %p52
        $region18: #{tpu_custom_call.1} parent=15 // pred_check_branch
          %137 = sbr.rel (%p135) target = $region20
        $region19: #{tpu_custom_call.1} parent=15 // pred_region
          %s138 = smul.u32 2, %s19
          %p139 = scmp.lt.s32.totalorder %s18, 1
          %s140 = scalar_select %p139, %s18, 1
          %p141 = scmp.lt.s32.totalorder %s138, 1
          %s142 = scalar_select %p141, %s138, 1
          %s143 = smul.addr %s140, 2
          %s144 = sadd.s32 %s142, %s143
          %s145 = smul.addr %s144, 8
          %s146 = scalar_lea.vmem %s0, %s145
          %s147 = smul.u32 2, %s19
        $region20: #{tpu_custom_call.1} parent=15 // pred_fallthru
          _
        // Predicated region
        $region21: #{tpu_custom_call.1} parent=15 // pred_check
          %p148 = pneg %p80
        $region22: #{tpu_custom_call.1} parent=15 // pred_check_branch
          %150 = sbr.rel (%p148) target = $region24
        $region23: #{tpu_custom_call.1} parent=15 // pred_region
          %p151 = scmp.lt.s32.totalorder %s18, 1
          %s152 = scalar_select %p151, %s18, 1
          %p153 = scmp.lt.s32.totalorder %s20, 0
          %s154 = scalar_select %p153, %s20, 0
          %s155 = sadd.s32 %s154, %s152
          %s156 = smul.addr %s155, 4
          %s157 = scalar_lea.vmem %s1, %s156
        $region24: #{tpu_custom_call.1} parent=15 // pred_fallthru
          _
      $region16: #{tpu_custom_call.1} parent=5 // pred_fallthru
        _
      %p158 = scmp.le.s32.totalorder 1, %s11
      %p159 = scmp.lt.s32.totalorder %s11, 3
      %p160 = pnand %p158, %p159
      %p161 = pneg %p160
      // Predicated region
      $region25: #{tpu_custom_call.1} parent=5 // pred_check
        _
      $region26: #{tpu_custom_call.1} parent=5 // pred_check_branch
        %163 = sbr.rel (%p160) target = $region28
      $region27: #{tpu_custom_call.1} parent=5 // pred_region
        %s164 = ssub.s32 %s11, 1
        %s165 = smul.u32 2, %s22
        %p166 = scmp.lt.s32.totalorder %s21, 1
        %s167 = scalar_select %p166, %s21, 1
        %p168 = scmp.lt.s32.totalorder %s165, 1
        %s169 = scalar_select %p168, %s165, 1
        %s170 = smul.addr %s167, 2
        %s171 = sadd.s32 %s169, %s170
        %s172 = smul.addr %s171, 8
        %s173 = scalar_lea.vmem %s0, %s172
        %p174 = pneg %p58
        %p175 = pneg %p55
        %p176 = scmp.lt.s32.totalorder %s21, 1
        %s177 = scalar_select %p176, %s21, 1
        %p178 = scmp.lt.s32.totalorder %s23, 0
        %s179 = scalar_select %p178, %s23, 0
        %s180 = sadd.s32 %s179, %s177
        %s181 = smul.addr %s180, 4
        %s182 = scalar_lea.vmem %s1, %s181
        %p183 = pneg %p86
        %p184 = pneg %p83
        %p185 = pneg %p116
        %p186 = pneg %p113
        %s187 = sand.u32 %s103, 1
        %s188 = scalar_lea.sflag [#allocation3], %s187
        %s189 = sand.u32 %s103, 1
        %s190 = smul.addr %s189, 16
        %s191 = scalar_lea.vmem [#allocation2], %s190
        %s192 = smul.u32 2, %s22
        %p193 = scmp.lt.s32.totalorder %s21, 1
        %s194 = scalar_select %p193, %s21, 1
        %p195 = scmp.lt.s32.totalorder %s192, 1
        %s196 = scalar_select %p195, %s192, 1
        %s197 = smul.addr %s194, 2
        %s198 = sadd.s32 %s196, %s197
        %s199 = smul.addr %s198, 8
        %s200 = scalar_lea.vmem %s0, %s199
        %s201 = smul.u32 2, %s22
        %p202 = scmp.lt.s32.totalorder %s21, 1
        %s203 = scalar_select %p202, %s21, 1
        %p204 = scmp.lt.s32.totalorder %s23, 0
        %s205 = scalar_select %p204, %s23, 0
        %s206 = sadd.s32 %s205, %s203
        %s207 = smul.addr %s206, 4
        %s208 = scalar_lea.vmem %s1, %s207
        %s209 = smul.u32 2, %s22
        %v210 = vld [vmem:[%s200] sm:$0xff]
        %v211 = vld [vmem:[%s200 + $0x8] sm:$0xff]
        %v212 = vld [vmem:[%s208] sm:$0x7]
        %214 = vset.pattern.permute.xlu0 0
        %215 = vperm.xlu0 %214, %v210
        %v216 = vpop.permute.xlu0 %215
        %219 = vset.pattern.permute.xlu0 0
        %220 = vperm.xlu0 %219, %v211
        %v221 = vpop.permute.xlu0 %220
        %v223 = vlaneseq
        %v224 = vshrl.u32 %v223, 7
        %v225 = vsub.s32 0, %v224
        %v226 = vrot.slane %v212, %v225
        %v227 = vsub.f32 %v216, %v226
        %v228 = vsub.f32 %v221, %v226
        %v229 = vmul.f32 %v227, %v227
        %v230 = vmul.f32 %v228, %v228
        %231 = vset.pattern.permute.xlu0 1
        %232 = vperm.xlu0 %231, %v210
        %v233 = vpop.permute.xlu0 %232
        %235 = vset.pattern.permute.xlu0 1
        %236 = vperm.xlu0 %235, %v211
        %v237 = vpop.permute.xlu0 %236
        %v239 = vlaneseq
        %v240 = vshrl.u32 %v239, 7
        %v241 = vsub.s32 1, %v240
        %v242 = vrot.slane %v212, %v241
        %v243 = vsub.f32 %v233, %v242
        %v244 = vsub.f32 %v237, %v242
        %v245 = vmul.f32 %v243, %v243
        %v246 = vmul.f32 %v244, %v244
        %v247 = vadd.f32 %v229, %v245
        %v248 = vadd.f32 %v230, %v246
        %249 = vset.pattern.permute.xlu0 2
        %250 = vperm.xlu0 %249, %v210
        %v251 = vpop.permute.xlu0 %250
        %253 = vset.pattern.permute.xlu0 2
        %254 = vperm.xlu0 %253, %v211
        %v255 = vpop.permute.xlu0 %254
        %v257 = vlaneseq
        %v258 = vshrl.u32 %v257, 7
        %v259 = vsub.s32 2, %v258
        %v260 = vrot.slane %v212, %v259
        %v261 = vsub.f32 %v251, %v260
        %v262 = vsub.f32 %v255, %v260
        %v263 = vmul.f32 %v261, %v261
        %v264 = vmul.f32 %v262, %v262
        %v265 = vadd.f32 %v247, %v263
        %v266 = vadd.f32 %v248, %v264
        %vm267 = vcmask 130048
        %268 = vst.msk [vmem:[%s191] sm:$0xff] %vm267, %v265
        %269 = vst.msk [vmem:[%s191 + $0x8] sm:$0xff] %vm267, %v266
        %s270 = sand.u32 %s103, 1
        %s271 = scalar_lea.sflag [#allocation3], %s270
        %s272 = sand.u32 %s103, 1
        %s273 = smul.addr %s272, 16
        %s274 = scalar_lea.vmem [#allocation2], %s273
        // Predicated region
        $region29: #{tpu_custom_call.1} parent=27 // pred_check
          %p275 = pneg %p113
        $region30: #{tpu_custom_call.1} parent=27 // pred_check_branch
          %277 = sbr.rel (%p275) target = $region32
        $region31: #{tpu_custom_call.1} parent=27 // pred_region
          %s278 = smul.u32 2, %s22
          %s280 = ssub.s32 256, 256
          %281 = vsyncadd %s271, %s280
          %s282 = sadd.s32 %s23, %s278
          %s283 = smul.addr %s21, 2
          %s284 = sadd.s32 %s282, %s283
          %s285 = smul.addr %s284, 128
          %s286 = scalar_lea.hbm %s2, %s285
          %s287 = sshll.u32 %s274, 4
          %s288 = int_to_ptr.vmem [resolvable:$true] %s287
          %293 = dma.vmem_to_hbm [thread:$0]  %s288, 256, %s286, %s271, 128, 128, 8
        $region32: #{tpu_custom_call.1} parent=27 // pred_fallthru
          _
      $region28: #{tpu_custom_call.1} parent=5 // pred_fallthru
        _
      %p294 = scmp.le.s32.totalorder 2, %s11
      // Predicated region
      $region33: #{tpu_custom_call.1} parent=5 // pred_check
        %p295 = pneg %p294
      $region34: #{tpu_custom_call.1} parent=5 // pred_check_branch
        %297 = sbr.rel (%p295) target = $region36
      $region35: #{tpu_custom_call.1} parent=5 // pred_region
        %s298 = ssub.s32 %s11, 2
        // Predicated region
        $region37: #{tpu_custom_call.1} parent=35 // pred_check
          %p299 = pneg %p119
        $region38: #{tpu_custom_call.1} parent=35 // pred_check_branch
          %301 = sbr.rel (%p299) target = $region40
        $region39: #{tpu_custom_call.1} parent=35 // pred_region
          %s302 = sand.u32 %s104, 1
          %s303 = scalar_lea.sflag [#allocation3], %s302
          %s304 = sand.u32 %s104, 1
          %s305 = smul.addr %s304, 16
          %s306 = scalar_lea.vmem [#allocation2], %s305
          %307 = dma.done %s303, 256
        $region40: #{tpu_custom_call.1} parent=35 // pred_fallthru
          _
      $region36: #{tpu_custom_call.1} parent=5 // pred_fallthru
        _
    $region6: #{tpu_custom_call.1} parent=1 // loop_footer
      %s15 = sadd.s32 1, %s11
    $region7: #{tpu_custom_call.1} parent=1 // loop_footer_branch
      %10 = sbr.rel target = $region3
    $region8: #{tpu_custom_call.1} parent=1 // loop_exit
      _
    %308 = vsyncpa [#allocation3], 1
    %s309 = scalar_lea.sflag [#allocation3], 1
    %310 = vsyncpa %s309, 1

</llo_original>
